<compile_context>
chip_gen: v7x
topology: tpu7x:2x2x1
jax: 0.10.0
libtpu: 0.0.40
codegen_flags: <defaults>
</compile_context>

<pallas_src>
import functools
import math

import jax
import jax.numpy as jnp
from jax import lax
from jax.experimental import pallas as pl
from jax.experimental.pallas import tpu as pltpu

URF_SIGMA_SCALE_FACTOR = 3.0


def _round_up(x, m):
    return ((x + m - 1) // m) * m


def _pow_urf_kernel(consts_ref, steps_ref, deltas_ref, density_ref,
                    weights_ref, ray_ref, out_ref, *, mask_scale, is_euclidean):
    f32 = jnp.float32
    # sigma-derived constants precomputed in the wrapper (SMEM scalars).
    sigma = consts_ref[0]
    inv_2s2 = consts_ref[1]        # 1 / (2 * scale^2)
    norm_const = consts_ref[2]     # 1 / (scale * sqrt(2*pi))

    rays = ray_ref[...]                                   # (TR, 3) f32
    term = rays[:, 0:1]
    pred = rays[:, 1:2]
    if is_euclidean:
        term = term * rays[:, 2:3]
    depth_mask = (term > 0).astype(f32)                   # (TR, 1)
    expected_depth_loss = (term - pred) * (term - pred)   # (TR, 1)

    steps = steps_ref[...].astype(f32)                    # (TR, N)
    density = density_ref[...].astype(f32)                # (TR, N)

    diff = steps - term                                   # broadcast (TR, N)
    diff2 = diff * diff
    focal = mask_scale * diff2                            # regularize_fn = square

    empty_f = (steps <= term - sigma).astype(f32)
    dist_f = (steps >= term + sigma).astype(f32)
    # exact complement: spec boundaries (<= / >=) put edges in empty/dist,
    # so near = 1 - empty - dist with no extra compares / logical_and.
    near_f = 1.0 - empty_f - dist_f

    # --- transmittance^2 = exp(-2 * exclusive_cumsum(deltas * density)) ----
    # lane-axis exclusive cumsum on the MXU via a strictly-upper-triangular
    # matrix generated in-kernel; factor 2 baked in so the squaring is free.
    # Default f32 matmul precision matched the exact reference at 1e-4 on the
    # tested depth ranges.
    # TODO(synk): for N >> 256 swap this O(N^2) matmul (and its N^2 VMEM) for
    # a log2(N)-step pltpu.roll shift-and-add exclusive scan.
    n = steps_ref.shape[-1]
    row = lax.broadcasted_iota(jnp.int32, (n, n), 0)
    col = lax.broadcasted_iota(jnp.int32, (n, n), 1)
    tri2 = jnp.where(row < col, jnp.float32(2.0), jnp.float32(0.0))
    dd = deltas_ref[...].astype(f32) * density
    trans_sq = jnp.exp(-jnp.dot(dd, tri2, preferred_element_type=f32))

    # --- near-zone normalized Gaussian target ------------------------------
    target = jnp.exp(-(diff2 * inv_2s2)) * norm_const
    div_value = jnp.sum(target * near_f, axis=-1, keepdims=True)   # (TR, 1)
    div_safe = jnp.maximum(div_value, jnp.float32(1e-20))
    inv_div = pl.reciprocal(div_safe, approx=True)
    inv_div = inv_div * (2.0 - div_safe * inv_div)        # one Newton refinement
    near_err = weights_ref[...].astype(f32) - target * inv_div

    # --- fused per-element loss, single lane reduce -------------------------
    per_elem = (focal * (empty_f * (density * density) + dist_f * trans_sq)
                + near_f * (near_err * near_err))
    los = jnp.sum(per_elem, axis=-1, keepdims=True)       # (TR, 1)

    out_ref[...] = (expected_depth_loss + los) * depth_mask


def pow_urf_loss(weights, steps, deltas, termination_depth, predicted_depth,
                 sigma, directions_norm, density, *,
                 is_euclidean=True, mask_scale=2.0, tile_rays=None):
    """Pallas implementation of PowURFLoss.forward. Returns scalar loss."""
    f32 = jnp.float32
    R, N = steps.shape

    in_itemsize = max(jnp.dtype(a.dtype).itemsize
                      for a in (steps, deltas, density, weights))
    # minimum sublane tile: 8 rows for f32 inputs, 16 for bf16 (packed tiling).
    mt = max(8, 32 // in_itemsize)
    R_padm = _round_up(max(R, mt), mt)

    # --- tile sizing --------------------------------------------------------
    if tile_rays is None:
        # honest per-row VMEM working set.
        bytes_per_row = (4 * 2 * N * in_itemsize   # 4 sample inputs, 2 buffers
                         + 2 * 128 * 4             # (TR, 3) ray pack, lane-padded
                         + 2 * 128 * 4             # (TR, 1) output, lane-padded
                         + 12 * N * 4)             # live f32 temporaries allowance
        fixed_bytes = N * N * 4 + (2 << 20)        # in-kernel tri + slack
        budget = 28 * 1024 * 1024
        cap = max(mt, (budget - fixed_bytes) // bytes_per_row)
        target = int(min(2048, cap))
        # megacore (v7x has 2 TensorCores): aim for >= 4 grid steps
        # (>= 2 for tiny R) so ("parallel",) can shard across cores.
        quarter = max(mt, (R_padm // 4) // mt * mt)
        half = max(mt, (R_padm // 2) // mt * mt)
        target = int(min(target, max(quarter, 256), half, R_padm))
        target = max(mt, (target // mt) * mt)
        # prefer a tile that divides R (avoids a full wrapper-side pad/copy of
        # the four [R, N] arrays); fall back to padding if only tiny divisors.
        d = target
        while d >= mt:
            if R_padm % d == 0:
                break
            d -= mt
        tile_rays = d if d >= max(32, target // 8) else target
    tile_rays = max(mt, (int(tile_rays) // mt) * mt)
    R_pad = _round_up(max(R, mt), tile_rays)

    def pad_rows(x):
        if x.shape[0] == R_pad:
            return x
        pads = [(0, R_pad - x.shape[0])] + [(0, 0)] * (x.ndim - 1)
        return jnp.pad(x, pads)

    # sample arrays keep their native dtype (bf16 stays bf16 -> half the DMA
    # bytes); upcast happens in-kernel.
    steps_p = pad_rows(steps)
    deltas_p = pad_rows(deltas)
    density_p = pad_rows(density)
    weights_p = pad_rows(weights)
    # pack the three per-ray vectors into one (R_pad, 3) array (single DMA).
    ray_packed = pad_rows(jnp.concatenate(
        [termination_depth.astype(f32), predicted_depth.astype(f32),
         directions_norm.astype(f32)], axis=-1))          # padded term=0 => masked

    # sigma-derived scalar constants, computed once in the wrapper.
    sigma_f = jnp.asarray(sigma, f32)
    scale = sigma_f / URF_SIGMA_SCALE_FACTOR
    inv_2s2 = 1.0 / (2.0 * scale * scale)
    norm_const = 1.0 / (scale * jnp.sqrt(jnp.float32(2.0 * math.pi)))
    consts = jnp.stack([sigma_f, inv_2s2, norm_const,
                        jnp.float32(0.0)]).astype(f32)    # (4,) -> SMEM

    # explicit scoped-VMEM limit from the working-set estimate (covers v5e's
    # 16 MiB default; capped at v7x's 64 MiB physical per-TC VMEM).
    est_vmem = (tile_rays * (4 * 2 * N * in_itemsize + 2 * 128 * 4
                             + 2 * 128 * 4 + 12 * N * 4)
                + N * N * 4)
    vmem_limit = int(min(64 << 20, max(32 << 20, est_vmem + (8 << 20))))

    kernel = functools.partial(_pow_urf_kernel,
                               mask_scale=float(mask_scale),
                               is_euclidean=bool(is_euclidean))

    sample_spec = lambda: pl.BlockSpec((tile_rays, N), lambda i: (i, 0))

    per_ray_loss = pl.pallas_call(
        kernel,
        out_shape=jax.ShapeDtypeStruct((R_pad, 1), f32),
        grid_spec=pltpu.PrefetchScalarGridSpec(
            num_scalar_prefetch=0,
            grid=(R_pad // tile_rays,),
            in_specs=[
                pl.BlockSpec(memory_space=pltpu.MemorySpace.SMEM),  # consts
                sample_spec(),                                      # steps
                sample_spec(),                                      # deltas
                sample_spec(),                                      # density
                sample_spec(),                                      # weights
                pl.BlockSpec((tile_rays, 3), lambda i: (i, 0)),     # per-ray pack
            ],
            out_specs=pl.BlockSpec((tile_rays, 1), lambda i: (i, 0))),
        compiler_params=pltpu.CompilerParams(
            dimension_semantics=("parallel",),
            vmem_limit_bytes=vmem_limit),
    )(consts, steps_p, deltas_p, density_p, weights_p, ray_packed)

    # loss.mean() over an [R, 1] tensor == sum / R (padded rows contribute 0).
    return jnp.sum(per_ray_loss) / R


def pow_urf_loss_ref(weights, steps, deltas, termination_depth, predicted_depth,
                     sigma, directions_norm, density, *,
                     is_euclidean, mask_scale):
    """Pure-JAX reference mirroring the PyTorch module (torch shapes)."""
    w = weights.astype(jnp.float32)[..., None]
    st = steps.astype(jnp.float32)[..., None]
    dn = density.astype(jnp.float32)[..., None]
    term = termination_depth
    if is_euclidean:
        term = term * directions_norm
    depth_mask = (term > 0).astype(jnp.float32)
    edl = (term - predicted_depth) ** 2
    term3 = term[:, None]
    diff = st - term3
    focal = mask_scale * diff ** 2
    empty_mask = (st <= term3 - sigma).astype(jnp.float32)
    los_empty = (empty_mask * focal * dn ** 2).sum(-2)
    dd = deltas.astype(jnp.float32)[..., None] * dn
    ecs = jnp.cumsum(dd, axis=-2) - dd        # exclusive cumsum
    trans = jnp.exp(-ecs)
    dist_mask = (st >= term3 + sigma).astype(jnp.float32)
    los_dist = (dist_mask * focal * trans ** 2).sum(-2)
    near_mask = jnp.logical_and(st < term3 + sigma, st > term3 - sigma)
    scale = sigma / URF_SIGMA_SCALE_FACTOR
    target = jnp.exp(-(diff ** 2) / (2 * scale ** 2)) / (scale * jnp.sqrt(2 * jnp.pi))
    div = (target * near_mask).sum(-2, keepdims=True)
    target = jnp.where(near_mask, target / div, 0.0)
    los_near = (near_mask * (w - target) ** 2).sum(-2)
    loss = (edl + los_empty + los_dist + los_near) * depth_mask
    return loss.mean()


def _make_inputs(key, R, N):
    k1, k2, k3, k4, k5, k6 = jax.random.split(key, 6)
    edges = jnp.sort(jax.random.uniform(k1, (R, N + 1), dtype=jnp.float32,
                                        minval=0.0, maxval=4.0), axis=-1)
    steps = 0.5 * (edges[:, :-1] + edges[:, 1:])
    deltas = edges[:, 1:] - edges[:, :-1]
    density = jax.random.uniform(k2, (R, N), dtype=jnp.float32) * 2.0
    weights = jax.random.uniform(k3, (R, N), dtype=jnp.float32) / N
    term = jax.random.uniform(k4, (R, 1), dtype=jnp.float32,
                              minval=0.5, maxval=3.5)
    # some rays with no lidar return -> exercise depth_mask
    term = term * (jax.random.uniform(k5, (R, 1)) > 0.1).astype(jnp.float32)
    pred = jax.random.uniform(k6, (R, 1), dtype=jnp.float32,
                              minval=0.5, maxval=3.5)
    dirn = jnp.full((R, 1), 1.1, dtype=jnp.float32)
    return steps, deltas, density, weights, term, pred, dirn


if __name__ == "__main__":
    key = jax.random.PRNGKey(0)
    sigma = jnp.float32(0.3)
    # Module init: is_euclidean=True, mask_scale=(2,10) -> current_mask_scale=2,
    # regularize_fn = square.
    is_euclidean = True
    mask_scale = 2.0

    # Case 1: small f32 case, auto-tiled (>= 2 grid steps for megacore).
    steps, deltas, density, weights, term, pred, dirn = _make_inputs(key, 32, 128)
    out = pow_urf_loss(weights, steps, deltas, term, pred, sigma, dirn, density,
                       is_euclidean=is_euclidean, mask_scale=mask_scale)
    out = jax.block_until_ready(out)
    ref = pow_urf_loss_ref(weights, steps, deltas, term, pred, sigma, dirn,
                           density, is_euclidean=is_euclidean,
                           mask_scale=mask_scale)
    ref = jax.block_until_ready(ref)
    assert jnp.allclose(out, ref, rtol=1e-4, atol=1e-5), (out, ref)

    # Case 2: non-multiple ray count + forced tile -> multi-tile parallel grid
    # exercising the row-padding fallback (padded rays masked by depth_mask).
    key2 = jax.random.PRNGKey(1)
    steps, deltas, density, weights, term, pred, dirn = _make_inputs(key2, 200, 128)
    out2 = pow_urf_loss(weights, steps, deltas, term, pred, sigma, dirn, density,
                        is_euclidean=is_euclidean, mask_scale=mask_scale,
                        tile_rays=64)
    out2 = jax.block_until_ready(out2)
    ref2 = pow_urf_loss_ref(weights, steps, deltas, term, pred, sigma, dirn,
                            density, is_euclidean=is_euclidean,
                            mask_scale=mask_scale)
    ref2 = jax.block_until_ready(ref2)
    assert jnp.allclose(out2, ref2, rtol=1e-4, atol=1e-5), (out2, ref2)

    # Case 3: bf16 sample inputs (half the HBM traffic), upcast in-kernel.
    key3 = jax.random.PRNGKey(2)
    steps, deltas, density, weights, term, pred, dirn = _make_inputs(key3, 64, 128)
    steps_b = steps.astype(jnp.bfloat16)
    deltas_b = deltas.astype(jnp.bfloat16)
    density_b = density.astype(jnp.bfloat16)
    weights_b = weights.astype(jnp.bfloat16)
    out3 = pow_urf_loss(weights_b, steps_b, deltas_b, term, pred, sigma, dirn,
                        density_b, is_euclidean=is_euclidean,
                        mask_scale=mask_scale)
    out3 = jax.block_until_ready(out3)
    ref3 = pow_urf_loss_ref(weights_b, steps_b, deltas_b, term, pred, sigma,
                            dirn, density_b, is_euclidean=is_euclidean,
                            mask_scale=mask_scale)
    ref3 = jax.block_until_ready(ref3)
    assert jnp.allclose(out3, ref3, rtol=2e-4, atol=1e-5), (out3, ref3)

    print("KERNEL_OK")
</pallas_src>

<mosaic_0001>
module attributes {stable_mosaic.version = 11 : i64} {
  func.func @_pow_urf_kernel(%arg0: i32, %arg1: memref<4xf32, #tpu.memory_space<smem>>, %arg2: memref<16x128xf32, #tpu.memory_space<vmem>>, %arg3: memref<16x128xf32, #tpu.memory_space<vmem>>, %arg4: memref<16x128xf32, #tpu.memory_space<vmem>>, %arg5: memref<16x128xf32, #tpu.memory_space<vmem>>, %arg6: memref<16x3xf32, #tpu.memory_space<vmem>>, %arg7: memref<16x1xf32, #tpu.memory_space<vmem>>) attributes {dimension_semantics = [#tpu.dimension_semantics<parallel>], iteration_bounds = array<i64: 2>, scalar_prefetch = 0 : i64, scratch_operands = 0 : i64, tpu.core_type = #tpu.core_type<tc>, window_params = [{transform_indices = @transform_0, window_bounds = array<i64: 4>}, {transform_indices = @transform_1, window_bounds = array<i64: 16, 128>}, {transform_indices = @transform_2, window_bounds = array<i64: 16, 128>}, {transform_indices = @transform_3, window_bounds = array<i64: 16, 128>}, {transform_indices = @transform_4, window_bounds = array<i64: 16, 128>}, {transform_indices = @transform_5, window_bounds = array<i64: 16, 3>}, {transform_indices = @transform_6, window_bounds = array<i64: 16, 1>}]} {
    %c0 = arith.constant 0 : index
    %0 = memref.load %arg1[%c0] : memref<4xf32, #tpu.memory_space<smem>>
    %c1 = arith.constant 1 : index
    %1 = memref.load %arg1[%c1] : memref<4xf32, #tpu.memory_space<smem>>
    %c2 = arith.constant 2 : index
    %2 = memref.load %arg1[%c2] : memref<4xf32, #tpu.memory_space<smem>>
    %c0_0 = arith.constant 0 : index
    %c0_1 = arith.constant 0 : index
    %3 = vector.load %arg6[%c0_0, %c0_1] : memref<16x3xf32, #tpu.memory_space<vmem>>, vector<16x3xf32>
    %4 = vector.extract_strided_slice %3 {offsets = [0, 0], sizes = [16, 1], strides = [1, 1]} : vector<16x3xf32> to vector<16x1xf32>
    %5 = vector.extract_strided_slice %3 {offsets = [0, 1], sizes = [16, 1], strides = [1, 1]} : vector<16x3xf32> to vector<16x1xf32>
    %6 = vector.extract_strided_slice %3 {offsets = [0, 2], sizes = [16, 1], strides = [1, 1]} : vector<16x3xf32> to vector<16x1xf32>
    %7 = arith.mulf %4, %6 : vector<16x1xf32>
    %cst = arith.constant 0.000000e+00 : f32
    %8 = vector.broadcast %cst : f32 to vector<16x1xf32>
    %9 = arith.cmpf ogt, %7, %8 : vector<16x1xf32>
    %10 = arith.extui %9 : vector<16x1xi1> to vector<16x1xi32>
    %11 = arith.sitofp %10 : vector<16x1xi32> to vector<16x1xf32>
    %12 = arith.subf %7, %5 : vector<16x1xf32>
    %13 = arith.subf %7, %5 : vector<16x1xf32>
    %14 = arith.mulf %12, %13 : vector<16x1xf32>
    %c0_2 = arith.constant 0 : index
    %c0_3 = arith.constant 0 : index
    %15 = vector.load %arg2[%c0_2, %c0_3] : memref<16x128xf32, #tpu.memory_space<vmem>>, vector<16x128xf32>
    %c0_4 = arith.constant 0 : index
    %c0_5 = arith.constant 0 : index
    %16 = vector.load %arg4[%c0_4, %c0_5] : memref<16x128xf32, #tpu.memory_space<vmem>>, vector<16x128xf32>
    %17 = vector.broadcast %7 : vector<16x1xf32> to vector<16x128xf32>
    %18 = arith.subf %15, %17 : vector<16x128xf32>
    %19 = arith.mulf %18, %18 : vector<16x128xf32>
    %cst_6 = arith.constant 2.000000e+00 : f32
    %20 = vector.broadcast %cst_6 : f32 to vector<16x128xf32>
    %21 = arith.mulf %20, %19 : vector<16x128xf32>
    %22 = vector.broadcast %0 : f32 to vector<16x1xf32>
    %23 = arith.subf %7, %22 : vector<16x1xf32>
    %24 = vector.broadcast %23 : vector<16x1xf32> to vector<16x128xf32>
    %25 = arith.cmpf ole, %15, %24 : vector<16x128xf32>
    %26 = arith.extui %25 : vector<16x128xi1> to vector<16x128xi32>
    %27 = arith.sitofp %26 : vector<16x128xi32> to vector<16x128xf32>
    %28 = vector.broadcast %0 : f32 to vector<16x1xf32>
    %29 = arith.addf %7, %28 : vector<16x1xf32>
    %30 = vector.broadcast %29 : vector<16x1xf32> to vector<16x128xf32>
    %31 = arith.cmpf oge, %15, %30 : vector<16x128xf32>
    %32 = arith.extui %31 : vector<16x128xi1> to vector<16x128xi32>
    %33 = arith.sitofp %32 : vector<16x128xi32> to vector<16x128xf32>
    %cst_7 = arith.constant 1.000000e+00 : f32
    %34 = vector.broadcast %cst_7 : f32 to vector<16x128xf32>
    %35 = arith.subf %34, %27 : vector<16x128xf32>
    %36 = arith.subf %35, %33 : vector<16x128xf32>
    %37 = tpu.iota {dimensions = array<i32: 0>} : vector<128x128xi32>
    %38 = tpu.iota {dimensions = array<i32: 1>} : vector<128x128xi32>
    %39 = arith.cmpi slt, %37, %38 : vector<128x128xi32>
    %cst_8 = arith.constant 2.000000e+00 : f32
    %cst_9 = arith.constant 0.000000e+00 : f32
    %40 = vector.broadcast %cst_8 : f32 to vector<128x128xf32>
    %41 = vector.broadcast %cst_9 : f32 to vector<128x128xf32>
    %42 = arith.select %39, %40, %41 : vector<128x128xi1>, vector<128x128xf32>
    %c0_10 = arith.constant 0 : index
    %c0_11 = arith.constant 0 : index
    %43 = vector.load %arg3[%c0_10, %c0_11] : memref<16x128xf32, #tpu.memory_space<vmem>>, vector<16x128xf32>
    %44 = arith.mulf %43, %16 : vector<16x128xf32>
    %cst_12 = arith.constant dense<0.000000e+00> : vector<16x128xf32>
    %45 = tpu.matmul %44, %42, %cst_12 {dimension_numbers = #tpu.dot_dimension_numbers<[1], [0], [0], [1], [0, 0, 1, 1], [], []>} : vector<16x128xf32>, vector<128x128xf32>, vector<16x128xf32> -> vector<16x128xf32>
    %cst_13 = arith.constant 0.000000e+00 : f32
    %46 = vector.broadcast %cst_13 : f32 to vector<16x128xf32>
    %47 = arith.subf %46, %45 : vector<16x128xf32>
    %48 = math.exp %47 : vector<16x128xf32>
    %49 = vector.broadcast %1 : f32 to vector<16x128xf32>
    %50 = arith.mulf %19, %49 : vector<16x128xf32>
    %cst_14 = arith.constant 0.000000e+00 : f32
    %51 = vector.broadcast %cst_14 : f32 to vector<16x128xf32>
    %52 = arith.subf %51, %50 : vector<16x128xf32>
    %53 = math.exp %52 : vector<16x128xf32>
    %54 = vector.broadcast %2 : f32 to vector<16x128xf32>
    %55 = arith.mulf %53, %54 : vector<16x128xf32>
    %56 = arith.mulf %55, %36 : vector<16x128xf32>
    %cst_15 = arith.constant dense<0.000000e+00> : vector<16xf32>
    %57 = vector.multi_reduction <add>, %56, %cst_15 [1] : vector<16x128xf32> to vector<16xf32>
    %58 = vector.shape_cast %57 : vector<16xf32> to vector<16x1xf32>
    %cst_16 = arith.constant 9.99999968E-21 : f32
    %59 = vector.broadcast %cst_16 : f32 to vector<16x1xf32>
    %60 = arith.maximumf %58, %59 : vector<16x1xf32>
    %61 = tpu.reciprocal %60 {approx = true} : vector<16x1xf32> -> vector<16x1xf32>
    %62 = arith.mulf %60, %61 : vector<16x1xf32>
    %cst_17 = arith.constant 2.000000e+00 : f32
    %63 = vector.broadcast %cst_17 : f32 to vector<16x1xf32>
    %64 = arith.subf %63, %62 : vector<16x1xf32>
    %65 = arith.mulf %61, %64 : vector<16x1xf32>
    %c0_18 = arith.constant 0 : index
    %c0_19 = arith.constant 0 : index
    %66 = vector.load %arg5[%c0_18, %c0_19] : memref<16x128xf32, #tpu.memory_space<vmem>>, vector<16x128xf32>
    %67 = vector.broadcast %65 : vector<16x1xf32> to vector<16x128xf32>
    %68 = arith.mulf %55, %67 : vector<16x128xf32>
    %69 = arith.subf %66, %68 : vector<16x128xf32>
    %70 = arith.mulf %16, %16 : vector<16x128xf32>
    %71 = arith.mulf %27, %70 : vector<16x128xf32>
    %72 = arith.mulf %33, %48 : vector<16x128xf32>
    %73 = arith.addf %71, %72 : vector<16x128xf32>
    %74 = arith.mulf %21, %73 : vector<16x128xf32>
    %75 = arith.mulf %69, %69 : vector<16x128xf32>
    %76 = arith.mulf %36, %75 : vector<16x128xf32>
    %77 = arith.addf %74, %76 : vector<16x128xf32>
    %cst_20 = arith.constant dense<0.000000e+00> : vector<16xf32>
    %78 = vector.multi_reduction <add>, %77, %cst_20 [1] : vector<16x128xf32> to vector<16xf32>
    %79 = vector.shape_cast %78 : vector<16xf32> to vector<16x1xf32>
    %80 = arith.addf %14, %79 : vector<16x1xf32>
    %81 = arith.mulf %80, %11 : vector<16x1xf32>
    %c0_21 = arith.constant 0 : index
    %c0_22 = arith.constant 0 : index
    %82 = vector.load %arg7[%c0_21, %c0_22] : memref<16x1xf32, #tpu.memory_space<vmem>>, vector<16x1xf32>
    tpu.vector_store %arg7[%c0_21, %c0_22], %81 {strides = array<i32>} : memref<16x1xf32, #tpu.memory_space<vmem>>, vector<16x1xf32>,
    return
  }
  func.func @transform_0(%arg0: i32) -> i32 {
    %c0_i32 = arith.constant 0 : i32
    %c0_i32_0 = arith.constant 0 : i32
    return %c0_i32 : i32
  }
  func.func @transform_1(%arg0: i32) -> (i32, i32) {
    %c0_i32 = arith.constant 0 : i32
    %c0_i32_0 = arith.constant 0 : i32
    return %arg0, %c0_i32 : i32, i32
  }
  func.func @transform_2(%arg0: i32) -> (i32, i32) {
    %c0_i32 = arith.constant 0 : i32
    %c0_i32_0 = arith.constant 0 : i32
    return %arg0, %c0_i32 : i32, i32
  }
  func.func @transform_3(%arg0: i32) -> (i32, i32) {
    %c0_i32 = arith.constant 0 : i32
    %c0_i32_0 = arith.constant 0 : i32
    return %arg0, %c0_i32 : i32, i32
  }
  func.func @transform_4(%arg0: i32) -> (i32, i32) {
    %c0_i32 = arith.constant 0 : i32
    %c0_i32_0 = arith.constant 0 : i32
    return %arg0, %c0_i32 : i32, i32
  }
  func.func @transform_5(%arg0: i32) -> (i32, i32) {
    %c0_i32 = arith.constant 0 : i32
    %c0_i32_0 = arith.constant 0 : i32
    return %arg0, %c0_i32 : i32, i32
  }
  func.func @transform_6(%arg0: i32) -> (i32, i32) {
    %c0_i32 = arith.constant 0 : i32
    %c0_i32_0 = arith.constant 0 : i32
    return %arg0, %c0_i32 : i32, i32
  }
}

</mosaic_0001>

<llo_original>
// kernel: tpu_custom_call.1
$region0: #{tpu_custom_call.1}
  #allocation0 [shape = 'u32[]', space=smem, size = 0x4, offset = 0x4, fixed_abs, tag = 'smem constant byte address 0x4 - core index']
  #allocation1 [shape = 'u32[144,128]{1,0:T(1,128)}', space=vmem, size = 0x12000, scoped, tag = 'internal scratch']
  %s0 = inlined_call_operand.vmem [shape: f32[4], index: 0, kind: input, shape index: {}]
  %s1 = inlined_call_operand.vmem [shape: f32[32,128], index: 1, kind: input, shape index: {}]
  %s2 = inlined_call_operand.hbm [shape: f32[32,128], index: 2, kind: input, shape index: {}]
  %s3 = inlined_call_operand.hbm [shape: f32[32,128], index: 3, kind: input, shape index: {}]
  %s4 = inlined_call_operand.hbm [shape: f32[32,128], index: 4, kind: input, shape index: {}]
  %s5 = inlined_call_operand.vmem [shape: f32[32,3], index: 5, kind: input, shape index: {}]
  %s6 = inlined_call_operand.vmem [shape: f32[32,1], index: 6, kind: output, shape index: {}]
  %s7 = sld [smem:[#allocation0]]
  $region73: #{tpu_custom_call.1} parent=0
    _
  %s9 = ssub.s32 1, %s7
  %s10 = scalar_select 0, %s9, %s7
  $region1: #{tpu_custom_call.1} parent=0
    #allocation2 [shape = 'u8[512]{0}', space=smem, size = 0x200, scoped, tag = 'input window, operand 0, single buffered']
    #allocation3 [shape = 's32[2]{0}', space=sflag, size = 0x8, scoped, tag = 'scoped memory for tpu_custom_call.1']
    #allocation4 [shape = 's32[2]{0}', space=sflag, size = 0x8, scoped, tag = 'scoped memory for tpu_custom_call.1']
    #allocation5 [shape = 'u8[16384]{0}', space=vmem, size = 0x4000, scoped, tag = 'input window, operand 2']
    #allocation6 [shape = 'u8[16384]{0}', space=vmem, size = 0x4000, scoped, tag = 'input window, operand 3']
    #allocation7 [shape = 's32[2]{0}', space=sflag, size = 0x8, scoped, tag = 'scoped memory for tpu_custom_call.1']
    #allocation8 [shape = 'u8[16384]{0}', space=vmem, size = 0x4000, scoped, tag = 'input window, operand 4']
    %11 = vsyncpa [#allocation4], 0
    %12 = vsyncpa [#allocation3], 0
    %s13 = scalar_lea.sflag [#allocation3], 1
    %14 = vsyncpa %s13, 0
    %15 = vsyncpa [#allocation7], 0
    %s16 = scalar_lea.sflag [#allocation7], 1
    %17 = vsyncpa %s16, 0
    loop: start=0, step=1, limit=4
    $region2: #{tpu_custom_call.1} parent=1 // loop_pre_header
      _
    $region3: #{tpu_custom_call.1} parent=1 // loop_header
      %s19 = sphi 0, %s23
      %p20 = scmp.ge.s32.totalorder %s19, 4
      %s27 = sphi 0, %s27
      %s29 = sphi 0, %s27
      %s30 = sphi 0, %s29
      %s44 = sphi 0, %s30
      %s50 = sphi 0, %s52
      %s53 = sphi 0, %s50
      %s54 = sphi 0, %s53
      %s70 = sphi 0, %s54
      %s76 = sphi 0, %s78
      %s79 = sphi 0, %s76
      %s80 = sphi 0, %s79
      %s96 = sphi 0, %s80
      %s102 = sphi 0, %s104
      %s105 = sphi 0, %s102
      %s106 = sphi 0, %s105
      %s122 = sphi 0, %s106
      %s128 = sphi 0, %s130
      %s131 = sphi 0, %s128
      %s132 = sphi 0, %s131
      %s148 = sphi 0, %s132
      %s154 = sphi 0, %s156
      %s157 = sphi 0, %s154
      %s158 = sphi 0, %s157
      %s174 = sphi 0, %s158
      %s180 = sphi 0, %s182
      %s183 = sphi 0, %s180
      %s184 = sphi 0, %s183
      %s200 = sphi 0, %s184
    $region4: #{tpu_custom_call.1} parent=1 // loop_header_branch
      %22 = sbr.rel (%p20) target = $region8
    $region5: #{tpu_custom_call.1} parent=1 // loop_body
      %s24 = ssub.s32 %s19, 1
      %s25 = ssub.s32 %s19, 2
      %s26 = sadd.s32 %s19, 1
      %s28 = sadd.s32 %s27, 1
      %p31 = scmp.eq.s32.totalorder %s19, 1
      %p32 = scmp.ne.s32.totalorder %s27, %s29
      %p33 = scmp.eq.s32.totalorder %s19, 0
      %p34 = por %p32, %p33
      %p35 = scmp.ne.s32.totalorder %s27, %s29
      %p36 = scmp.eq.s32.totalorder %s24, 1
      %p37 = por %p35, %p36
      %p38 = scmp.ne.s32.totalorder %s29, %s30
      %p39 = scmp.eq.s32.totalorder %s24, 0
      %p40 = por %p38, %p39
      %p41 = scmp.ne.s32.totalorder %s29, %s30
      %p42 = scmp.eq.s32.totalorder %s25, 1
      %p43 = por %p41, %p42
      %p45 = scmp.ne.s32.totalorder %s30, %s44
      %p46 = scmp.eq.s32.totalorder %s25, 0
      %p47 = por %p45, %p46
      %s48 = ssub.s32 %s19, %s26
      %p49 = scmp.eq.s32.totalorder %s48, 0
      %s51 = sadd.s32 %s50, 1
      %s52 = scalar_select %p49, %s50, %s51
      %p55 = pneg %p49
      %p56 = scmp.eq.s32.totalorder %s19, 1
      %p57 = por %p55, %p56
      %p58 = scmp.ne.s32.totalorder %s50, %s53
      %p59 = scmp.eq.s32.totalorder %s19, 0
      %p60 = por %p58, %p59
      %p61 = scmp.ne.s32.totalorder %s50, %s53
      %p62 = scmp.eq.s32.totalorder %s24, 1
      %p63 = por %p61, %p62
      %p64 = scmp.ne.s32.totalorder %s53, %s54
      %p65 = scmp.eq.s32.totalorder %s24, 0
      %p66 = por %p64, %p65
      %p67 = scmp.ne.s32.totalorder %s53, %s54
      %p68 = scmp.eq.s32.totalorder %s25, 1
      %p69 = por %p67, %p68
      %p71 = scmp.ne.s32.totalorder %s54, %s70
      %p72 = scmp.eq.s32.totalorder %s25, 0
      %p73 = por %p71, %p72
      %s74 = ssub.s32 %s19, %s26
      %p75 = scmp.eq.s32.totalorder %s74, 0
      %s77 = sadd.s32 %s76, 1
      %s78 = scalar_select %p75, %s76, %s77
      %p81 = pneg %p75
      %p82 = scmp.eq.s32.totalorder %s19, 1
      %p83 = por %p81, %p82
      %p84 = scmp.ne.s32.totalorder %s76, %s79
      %p85 = scmp.eq.s32.totalorder %s19, 0
      %p86 = por %p84, %p85
      %p87 = scmp.ne.s32.totalorder %s76, %s79
      %p88 = scmp.eq.s32.totalorder %s24, 1
      %p89 = por %p87, %p88
      %p90 = scmp.ne.s32.totalorder %s79, %s80
      %p91 = scmp.eq.s32.totalorder %s24, 0
      %p92 = por %p90, %p91
      %p93 = scmp.ne.s32.totalorder %s79, %s80
      %p94 = scmp.eq.s32.totalorder %s25, 1
      %p95 = por %p93, %p94
      %p97 = scmp.ne.s32.totalorder %s80, %s96
      %p98 = scmp.eq.s32.totalorder %s25, 0
      %p99 = por %p97, %p98
      %s100 = ssub.s32 %s19, %s26
      %p101 = scmp.eq.s32.totalorder %s100, 0
      %s103 = sadd.s32 %s102, 1
      %s104 = scalar_select %p101, %s102, %s103
      %p107 = pneg %p101
      %p108 = scmp.eq.s32.totalorder %s19, 1
      %p109 = por %p107, %p108
      %p110 = scmp.ne.s32.totalorder %s102, %s105
      %p111 = scmp.eq.s32.totalorder %s19, 0
      %p112 = por %p110, %p111
      %p113 = scmp.ne.s32.totalorder %s102, %s105
      %p114 = scmp.eq.s32.totalorder %s24, 1
      %p115 = por %p113, %p114
      %p116 = scmp.ne.s32.totalorder %s105, %s106
      %p117 = scmp.eq.s32.totalorder %s24, 0
      %p118 = por %p116, %p117
      %p119 = scmp.ne.s32.totalorder %s105, %s106
      %p120 = scmp.eq.s32.totalorder %s25, 1
      %p121 = por %p119, %p120
      %p123 = scmp.ne.s32.totalorder %s106, %s122
      %p124 = scmp.eq.s32.totalorder %s25, 0
      %p125 = por %p123, %p124
      %s126 = ssub.s32 %s19, %s26
      %p127 = scmp.eq.s32.totalorder %s126, 0
      %s129 = sadd.s32 %s128, 1
      %s130 = scalar_select %p127, %s128, %s129
      %p133 = pneg %p127
      %p134 = scmp.eq.s32.totalorder %s19, 1
      %p135 = por %p133, %p134
      %p136 = scmp.ne.s32.totalorder %s128, %s131
      %p137 = scmp.eq.s32.totalorder %s19, 0
      %p138 = por %p136, %p137
      %p139 = scmp.ne.s32.totalorder %s128, %s131
      %p140 = scmp.eq.s32.totalorder %s24, 1
      %p141 = por %p139, %p140
      %p142 = scmp.ne.s32.totalorder %s131, %s132
      %p143 = scmp.eq.s32.totalorder %s24, 0
      %p144 = por %p142, %p143
      %p145 = scmp.ne.s32.totalorder %s131, %s132
      %p146 = scmp.eq.s32.totalorder %s25, 1
      %p147 = por %p145, %p146
      %p149 = scmp.ne.s32.totalorder %s132, %s148
      %p150 = scmp.eq.s32.totalorder %s25, 0
      %p151 = por %p149, %p150
      %s152 = ssub.s32 %s19, %s26
      %p153 = scmp.eq.s32.totalorder %s152, 0
      %s155 = sadd.s32 %s154, 1
      %s156 = scalar_select %p153, %s154, %s155
      %p159 = pneg %p153
      %p160 = scmp.eq.s32.totalorder %s19, 1
      %p161 = por %p159, %p160
      %p162 = scmp.ne.s32.totalorder %s154, %s157
      %p163 = scmp.eq.s32.totalorder %s19, 0
      %p164 = por %p162, %p163
      %p165 = scmp.ne.s32.totalorder %s154, %s157
      %p166 = scmp.eq.s32.totalorder %s24, 1
      %p167 = por %p165, %p166
      %p168 = scmp.ne.s32.totalorder %s157, %s158
      %p169 = scmp.eq.s32.totalorder %s24, 0
      %p170 = por %p168, %p169
      %p171 = scmp.ne.s32.totalorder %s157, %s158
      %p172 = scmp.eq.s32.totalorder %s25, 1
      %p173 = por %p171, %p172
      %p175 = scmp.ne.s32.totalorder %s158, %s174
      %p176 = scmp.eq.s32.totalorder %s25, 0
      %p177 = por %p175, %p176
      %s178 = ssub.s32 %s19, %s26
      %p179 = scmp.eq.s32.totalorder %s178, 0
      %s181 = sadd.s32 %s180, 1
      %s182 = scalar_select %p179, %s180, %s181
      %p185 = pneg %p179
      %p186 = scmp.eq.s32.totalorder %s19, 1
      %p187 = por %p185, %p186
      %p188 = scmp.ne.s32.totalorder %s180, %s183
      %p189 = scmp.eq.s32.totalorder %s19, 0
      %p190 = por %p188, %p189
      %p191 = scmp.ne.s32.totalorder %s180, %s183
      %p192 = scmp.eq.s32.totalorder %s24, 1
      %p193 = por %p191, %p192
      %p194 = scmp.ne.s32.totalorder %s183, %s184
      %p195 = scmp.eq.s32.totalorder %s24, 0
      %p196 = por %p194, %p195
      %p197 = scmp.ne.s32.totalorder %s183, %s184
      %p198 = scmp.eq.s32.totalorder %s25, 1
      %p199 = por %p197, %p198
      %p201 = scmp.ne.s32.totalorder %s184, %s200
      %p202 = scmp.eq.s32.totalorder %s25, 0
      %p203 = por %p201, %p202
      %p204 = scmp.le.s32.totalorder 1, %s19
      %p205 = scmp.lt.s32.totalorder %s19, 3
      %p206 = pnand %p204, %p205
      %p207 = pneg %p206
      // Predicated region
      $region9: #{tpu_custom_call.1} parent=5 // pred_check
        _
      $region10: #{tpu_custom_call.1} parent=5 // pred_check_branch
        %209 = sbr.rel (%p206) target = $region12
      $region11: #{tpu_custom_call.1} parent=5 // pred_region
        %s210 = ssub.s32 %s19, 1
        // Predicated region
        $region13: #{tpu_custom_call.1} parent=11 // pred_check
          %p211 = pneg %p40
        $region14: #{tpu_custom_call.1} parent=11 // pred_check_branch
          %213 = sbr.rel (%p211) target = $region16
        $region15: #{tpu_custom_call.1} parent=11 // pred_region
          %s215 = ssub.s32 16, 16
          %216 = vsyncadd [#allocation4], %s215
          %s218 = sshll.u32 %s0, 4
          %s219 = int_to_ptr.vmem [resolvable:$true] %s218
          %221 = dma.vmem_to_smem %s219, 16, [#allocation2], [#allocation4]
        $region16: #{tpu_custom_call.1} parent=11 // pred_fallthru
          _
      $region12: #{tpu_custom_call.1} parent=5 // pred_fallthru
        _
      %p222 = scmp.lt.s32.totalorder %s19, 2
      // Predicated region
      $region17: #{tpu_custom_call.1} parent=5 // pred_check
        %p223 = pneg %p222
      $region18: #{tpu_custom_call.1} parent=5 // pred_check_branch
        %225 = sbr.rel (%p223) target = $region20
      $region19: #{tpu_custom_call.1} parent=5 // pred_region
        // Predicated region
        $region21: #{tpu_custom_call.1} parent=19 // pred_check
          %p226 = pneg %p60
        $region22: #{tpu_custom_call.1} parent=19 // pred_check_branch
          %228 = sbr.rel (%p226) target = $region24
        $region23: #{tpu_custom_call.1} parent=19 // pred_region
          %s229 = smul.u32 2, %s19
          %p230 = scmp.lt.s32.totalorder %s229, 3
          %s231 = scalar_select %p230, %s229, 3
          %s232 = smul.addr %s231, 8
          %s233 = scalar_lea.vmem %s1, %s232
          %s234 = smul.u32 2, %s19
        $region24: #{tpu_custom_call.1} parent=19 // pred_fallthru
          _
        // Predicated region
        $region25: #{tpu_custom_call.1} parent=19 // pred_check
          %p235 = pneg %p86
        $region26: #{tpu_custom_call.1} parent=19 // pred_check_branch
          %237 = sbr.rel (%p235) target = $region28
        $region27: #{tpu_custom_call.1} parent=19 // pred_region
          %s238 = sand.u32 %s76, 1
          %s239 = scalar_lea.sflag [#allocation3], %s238
          %s240 = sand.u32 %s76, 1
          %s241 = smul.addr %s240, 16
          %s242 = scalar_lea.vmem [#allocation5], %s241
          %s243 = smul.u32 2, %s19
          %s245 = ssub.s32 256, 256
          %246 = vsyncadd %s239, %s245
          %s247 = smul.addr %s243, 128
          %s248 = scalar_lea.hbm %s2, %s247
          %s249 = sshll.u32 %s242, 4
          %s250 = int_to_ptr.vmem [resolvable:$true] %s249
          %255 = dma.hbm_to_vmem [thread:$0]  %s248, 256, %s250, %s239, 128, 128, 8
        $region28: #{tpu_custom_call.1} parent=19 // pred_fallthru
          _
        // Predicated region
        $region29: #{tpu_custom_call.1} parent=19 // pred_check
          %p256 = pneg %p112
        $region30: #{tpu_custom_call.1} parent=19 // pred_check_branch
          %258 = sbr.rel (%p256) target = $region32
        $region31: #{tpu_custom_call.1} parent=19 // pred_region
          %s259 = sand.u32 %s19, 1
          %s260 = scalar_lea.sflag [#allocation7], %s259
          %s261 = sand.u32 %s102, 1
          %s262 = smul.addr %s261, 16
          %s263 = scalar_lea.vmem [#allocation6], %s262
          %s264 = smul.u32 2, %s19
          %s266 = ssub.s32 256, 256
          %267 = vsyncadd %s260, %s266
          %s268 = smul.addr %s264, 128
          %s269 = scalar_lea.hbm %s3, %s268
          %s270 = sshll.u32 %s263, 4
          %s271 = int_to_ptr.vmem [resolvable:$true] %s270
          %276 = dma.hbm_to_vmem [thread:$0]  %s269, 256, %s271, %s260, 128, 128, 8
        $region32: #{tpu_custom_call.1} parent=19 // pred_fallthru
          _
        // Predicated region
        $region33: #{tpu_custom_call.1} parent=19 // pred_check
          %p277 = pneg %p138
        $region34: #{tpu_custom_call.1} parent=19 // pred_check_branch
          %279 = sbr.rel (%p277) target = $region36
        $region35: #{tpu_custom_call.1} parent=19 // pred_region
          %s280 = sand.u32 %s19, 1
          %s281 = scalar_lea.sflag [#allocation7], %s280
          %s282 = sand.u32 %s128, 1
          %s283 = smul.addr %s282, 16
          %s284 = scalar_lea.vmem [#allocation8], %s283
          %s285 = smul.u32 2, %s19
          %s287 = ssub.s32 256, 256
          %288 = vsyncadd %s281, %s287
          %s289 = smul.addr %s285, 128
          %s290 = scalar_lea.hbm %s4, %s289
          %s291 = sshll.u32 %s284, 4
          %s292 = int_to_ptr.vmem [resolvable:$true] %s291
          %297 = dma.hbm_to_vmem [thread:$0]  %s290, 256, %s292, %s281, 128, 128, 8
        $region36: #{tpu_custom_call.1} parent=19 // pred_fallthru
          _
        // Predicated region
        $region37: #{tpu_custom_call.1} parent=19 // pred_check
          %p298 = pneg %p164
        $region38: #{tpu_custom_call.1} parent=19 // pred_check_branch
          %300 = sbr.rel (%p298) target = $region40
        $region39: #{tpu_custom_call.1} parent=19 // pred_region
          %s301 = smul.u32 2, %s19
          %p302 = scmp.lt.s32.totalorder %s301, 3
          %s303 = scalar_select %p302, %s301, 3
          %s304 = smul.addr %s303, 8
          %s305 = scalar_lea.vmem %s5, %s304
          %s306 = smul.u32 2, %s19
        $region40: #{tpu_custom_call.1} parent=19 // pred_fallthru
          _
      $region20: #{tpu_custom_call.1} parent=5 // pred_fallthru
        _
      %p307 = scmp.le.s32.totalorder 1, %s19
      %p308 = scmp.lt.s32.totalorder %s19, 3
      %p309 = pnand %p307, %p308
      %p310 = pneg %p309
      // Predicated region
      $region41: #{tpu_custom_call.1} parent=5 // pred_check
        _
      $region42: #{tpu_custom_call.1} parent=5 // pred_check_branch
        %312 = sbr.rel (%p309) target = $region44
      $region43: #{tpu_custom_call.1} parent=5 // pred_region
        %s313 = ssub.s32 %s19, 1
        // Predicated region
        $region45: #{tpu_custom_call.1} parent=43 // pred_check
          %p314 = pneg %p40
        $region46: #{tpu_custom_call.1} parent=43 // pred_check_branch
          %316 = sbr.rel (%p314) target = $region48
        $region47: #{tpu_custom_call.1} parent=43 // pred_region
          %317 = dma.done [#allocation4], 16
        $region48: #{tpu_custom_call.1} parent=43 // pred_fallthru
          _
        %s318 = sand.u32 %s79, 1
        %s319 = scalar_lea.sflag [#allocation3], %s318
        %s320 = sand.u32 %s79, 1
        %s321 = smul.addr %s320, 16
        %s322 = scalar_lea.vmem [#allocation5], %s321
        // Predicated region
        $region49: #{tpu_custom_call.1} parent=43 // pred_check
          %p323 = pneg %p92
        $region50: #{tpu_custom_call.1} parent=43 // pred_check_branch
          %325 = sbr.rel (%p323) target = $region52
        $region51: #{tpu_custom_call.1} parent=43 // pred_region
          %326 = dma.done %s319, 256
        $region52: #{tpu_custom_call.1} parent=43 // pred_fallthru
          _
        %s327 = sand.u32 %s24, 1
        %s328 = scalar_lea.sflag [#allocation7], %s327
        %s329 = sand.u32 %s105, 1
        %s330 = smul.addr %s329, 16
        %s331 = scalar_lea.vmem [#allocation6], %s330
        // Predicated region
        $region53: #{tpu_custom_call.1} parent=43 // pred_check
          %p332 = pneg %p118
        $region54: #{tpu_custom_call.1} parent=43 // pred_check_branch
          %334 = sbr.rel (%p332) target = $region56
        $region55: #{tpu_custom_call.1} parent=43 // pred_region
          %335 = dma.done %s328, 256
        $region56: #{tpu_custom_call.1} parent=43 // pred_fallthru
          _
        %s336 = sand.u32 %s24, 1
        %s337 = scalar_lea.sflag [#allocation7], %s336
        %s338 = sand.u32 %s131, 1
        %s339 = smul.addr %s338, 16
        %s340 = scalar_lea.vmem [#allocation8], %s339
        // Predicated region
        $region57: #{tpu_custom_call.1} parent=43 // pred_check
          %p341 = pneg %p144
        $region58: #{tpu_custom_call.1} parent=43 // pred_check_branch
          %343 = sbr.rel (%p341) target = $region60
        $region59: #{tpu_custom_call.1} parent=43 // pred_region
          %344 = dma.done %s337, 256
        $region60: #{tpu_custom_call.1} parent=43 // pred_fallthru
          _
        %345 = sfence
        %p346 = pneg %p40
        %p347 = pneg %p37
        %s348 = smul.u32 2, %s24
        %p349 = scmp.lt.s32.totalorder %s348, 3
        %s350 = scalar_select %p349, %s348, 3
        %s351 = smul.addr %s350, 8
        %s352 = scalar_lea.vmem %s1, %s351
        %p353 = pneg %p66
        %p354 = pneg %p63
        %s355 = sand.u32 %s79, 1
        %s356 = scalar_lea.sflag [#allocation3], %s355
        %s357 = sand.u32 %s79, 1
        %s358 = smul.addr %s357, 16
        %s359 = scalar_lea.vmem [#allocation5], %s358
        %p360 = pneg %p92
        %p361 = pneg %p89
        %s362 = sand.u32 %s24, 1
        %s363 = scalar_lea.sflag [#allocation7], %s362
        %s364 = sand.u32 %s105, 1
        %s365 = smul.addr %s364, 16
        %s366 = scalar_lea.vmem [#allocation6], %s365
        %p367 = pneg %p118
        %p368 = pneg %p115
        %s369 = sand.u32 %s24, 1
        %s370 = scalar_lea.sflag [#allocation7], %s369
        %s371 = sand.u32 %s131, 1
        %s372 = smul.addr %s371, 16
        %s373 = scalar_lea.vmem [#allocation8], %s372
        %p374 = pneg %p144
        %p375 = pneg %p141
        %s376 = smul.u32 2, %s24
        %p377 = scmp.lt.s32.totalorder %s376, 3
        %s378 = scalar_select %p377, %s376, 3
        %s379 = smul.addr %s378, 8
        %s380 = scalar_lea.vmem %s5, %s379
        %p381 = pneg %p170
        %p382 = pneg %p167
        %p383 = pneg %p196
        %p384 = pneg %p193
        %s385 = smul.u32 2, %s24
        %p386 = scmp.lt.s32.totalorder %s385, 3
        %s387 = scalar_select %p386, %s385, 3
        %s388 = smul.addr %s387, 8
        %s389 = scalar_lea.vmem %s6, %s388
        %s390 = smul.u32 2, %s24
        %p391 = scmp.lt.s32.totalorder %s390, 3
        %s392 = scalar_select %p391, %s390, 3
        %s393 = smul.addr %s392, 8
        %s394 = scalar_lea.vmem %s1, %s393
        %s395 = smul.u32 2, %s24
        %s396 = smul.u32 2, %s24
        %s397 = smul.u32 2, %s24
        %s398 = smul.u32 2, %s24
        %s399 = smul.u32 2, %s24
        %p400 = scmp.lt.s32.totalorder %s399, 3
        %s401 = scalar_select %p400, %s399, 3
        %s402 = smul.addr %s401, 8
        %s403 = scalar_lea.vmem %s5, %s402
        %s404 = smul.u32 2, %s24
        %s405 = smul.u32 2, %s24
        %p406 = scmp.lt.s32.totalorder %s405, 3
        %s407 = scalar_select %p406, %s405, 3
        %s408 = smul.addr %s407, 8
        %s409 = scalar_lea.vmem %s6, %s408
        %s410 = smul.u32 2, %s24
        %s411 = sld [smem:[#allocation2]]
        %s412 = sld [smem:[#allocation2 + $0x1]]
        %s413 = sld [smem:[#allocation2 + $0x2]]
        %v414 = vld [vmem:[%s403] sm:$0xff]
        %v415 = vld [vmem:[%s403 + $0x8] sm:$0xff]
        %418 = vrot.lane.b32.xlu0 %v414, 126
        %v419 = vpop.permute.xlu0 %418
        %420 = vrot.lane.b32.xlu0 %v415, 126
        %v421 = vpop.permute.xlu0 %420
        %v424 = vmul.f32 %v414, %v419
        %v425 = vmul.f32 %v415, %v421
        %vm426 = vcmp.gt.f32.partialorder %v424, 0.0
        %vm427 = vcmp.gt.f32.partialorder %v425, 0.0
        %v428 = vsel %vm426, 1, 0
        %v429 = vsel %vm427, 1, 0
        %v430 = vcvt.s32.f32 %v428
        %v431 = vcvt.s32.f32 %v429
        %432 = vrot.lane.b32.xlu0 %v414, 127
        %v433 = vpop.permute.xlu0 %432
        %434 = vrot.lane.b32.xlu0 %v415, 127
        %v435 = vpop.permute.xlu0 %434
        %v438 = vsub.f32 %v424, %v433
        %v439 = vsub.f32 %v425, %v435
        %v440 = vmul.f32 %v438, %v438
        %v441 = vmul.f32 %v439, %v439
        %v442 = vld [vmem:[%s394] sm:$0xff]
        %v443 = vld [vmem:[%s394 + $0x8] sm:$0xff]
        %v444 = vld [vmem:[%s331] sm:$0xff]
        %v445 = vld [vmem:[%s331 + $0x8] sm:$0xff]
        %447 = vset.pattern.permute.xlu0 0
        %448 = vperm.xlu0 %447, %v424
        %v449 = vpop.permute.xlu0 %448
        %452 = vset.pattern.permute.xlu0 0
        %453 = vperm.xlu0 %452, %v425
        %v454 = vpop.permute.xlu0 %453
        %v456 = vsub.f32 %v442, %v449
        %v457 = vsub.f32 %v443, %v454
        %v458 = vmul.f32 %v456, %v456
        %v459 = vmul.f32 %v457, %v457
        %v460 = vmul.f32 %v458, 2.0
        %v461 = vmul.f32 %v459, 2.0
        %v462 = vstv %s411
        %v463 = vsub.f32 %v424, %v462
        %v464 = vsub.f32 %v425, %v462
        %466 = vset.pattern.permute.xlu0 0
        %467 = vperm.xlu0 %466, %v463
        %v468 = vpop.permute.xlu0 %467
        %471 = vset.pattern.permute.xlu0 0
        %472 = vperm.xlu0 %471, %v464
        %v473 = vpop.permute.xlu0 %472
        %vm475 = vcmp.le.f32.partialorder %v442, %v468
        %vm476 = vcmp.le.f32.partialorder %v443, %v473
        %v477 = vsel %vm475, 1, 0
        %v478 = vsel %vm476, 1, 0
        %v479 = vcvt.s32.f32 %v477
        %v480 = vcvt.s32.f32 %v478
        %v481 = vadd.f32 %v424, %v462
        %v482 = vadd.f32 %v425, %v462
        %484 = vset.pattern.permute.xlu0 0
        %485 = vperm.xlu0 %484, %v481
        %v486 = vpop.permute.xlu0 %485
        %489 = vset.pattern.permute.xlu0 0
        %490 = vperm.xlu0 %489, %v482
        %v491 = vpop.permute.xlu0 %490
        %vm493 = vcmp.ge.f32.partialorder %v442, %v486
        %vm494 = vcmp.ge.f32.partialorder %v443, %v491
        %v495 = vsel %vm493, 1, 0
        %v496 = vsel %vm494, 1, 0
        %v497 = vcvt.s32.f32 %v495
        %v498 = vcvt.s32.f32 %v496
        %v499 = vsub.f32 1.0, %v479
        %v500 = vsub.f32 1.0, %v480
        %v501 = vsub.f32 %v499, %v497
        %v502 = vsub.f32 %v500, %v498
        %v503 = vlaneseq
        %v504 = vshrl.u32 %v503, 7
        %v505 = vadd.s32 %v504, 8
        %v506 = vadd.s32 %v504, 16
        %v507 = vadd.s32 %v504, 24
        %v508 = vadd.s32 %v504, 32
        %v509 = vadd.s32 %v504, 40
        %v510 = vadd.s32 %v504, 48
        %v511 = vadd.s32 %v504, 56
        %v512 = vadd.s32 %v504, 64
        %v513 = vadd.s32 %v504, 72
        %v514 = vadd.s32 %v504, 80
        %v515 = vadd.s32 %v504, 88
        %v516 = vadd.s32 %v504, 96
        %v517 = vadd.s32 %v504, 104
        %v518 = vadd.s32 %v504, 112
        %v519 = vadd.s32 %v504, 120
        %v520 = vlaneseq
        %v521 = vand.u32 %v520, 127
        %vm522 = vcmp.lt.s32.totalorder %v504, %v521
        %vm523 = vcmp.lt.s32.totalorder %v505, %v521
        %vm524 = vcmp.lt.s32.totalorder %v506, %v521
        %vm525 = vcmp.lt.s32.totalorder %v507, %v521
        %vm526 = vcmp.lt.s32.totalorder %v508, %v521
        %vm527 = vcmp.lt.s32.totalorder %v509, %v521
        %vm528 = vcmp.lt.s32.totalorder %v510, %v521
        %vm529 = vcmp.lt.s32.totalorder %v511, %v521
        %vm530 = vcmp.lt.s32.totalorder %v512, %v521
        %vm531 = vcmp.lt.s32.totalorder %v513, %v521
        %vm532 = vcmp.lt.s32.totalorder %v514, %v521
        %vm533 = vcmp.lt.s32.totalorder %v515, %v521
        %vm534 = vcmp.lt.s32.totalorder %v516, %v521
        %vm535 = vcmp.lt.s32.totalorder %v517, %v521
        %vm536 = vcmp.lt.s32.totalorder %v518, %v521
        %vm537 = vcmp.lt.s32.totalorder %v519, %v521
        %v538 = vsel %vm522, 2.0, 0.0
        %v539 = vsel %vm523, 2.0, 0.0
        %v540 = vsel %vm524, 2.0, 0.0
        %v541 = vsel %vm525, 2.0, 0.0
        %v542 = vsel %vm526, 2.0, 0.0
        %v543 = vsel %vm527, 2.0, 0.0
        %v544 = vsel %vm528, 2.0, 0.0
        %v545 = vsel %vm529, 2.0, 0.0
        %v546 = vsel %vm530, 2.0, 0.0
        %v547 = vsel %vm531, 2.0, 0.0
        %v548 = vsel %vm532, 2.0, 0.0
        %v549 = vsel %vm533, 2.0, 0.0
        %v550 = vsel %vm534, 2.0, 0.0
        %v551 = vsel %vm535, 2.0, 0.0
        %v552 = vsel %vm536, 2.0, 0.0
        %v553 = vsel %vm537, 2.0, 0.0
        %v554 = vld [vmem:[%s322] sm:$0xff]
        %v555 = vld [vmem:[%s322 + $0x8] sm:$0xff]
        %v556 = vmul.f32 %v554, %v444
        %v557 = vmul.f32 %v555, %v445
        %558 = vmatprep.subr.mxu0 0.0
        %559 = vmatpush1.msra.mxu0 %v538
        %560 = vmatprep.subr.mxu0 0.0
        %561 = vmatpush1.msra.mxu0 %v539
        %562 = vmatprep.subr.mxu0 0.0
        %563 = vmatpush1.msra.mxu0 %v540
        %564 = vmatprep.subr.mxu0 0.0
        %565 = vmatpush1.msra.mxu0 %v541
        %566 = vmatprep.subr.mxu0 0.0
        %567 = vmatpush1.msra.mxu0 %v542
        %568 = vmatprep.subr.mxu0 0.0
        %569 = vmatpush1.msra.mxu0 %v543
        %570 = vmatprep.subr.mxu0 0.0
        %571 = vmatpush1.msra.mxu0 %v544
        %572 = vmatprep.subr.mxu0 0.0
        %573 = vmatpush1.msra.mxu0 %v545
        %574 = vmatprep.subr.mxu0 0.0
        %575 = vmatpush1.msra.mxu0 %v546
        %576 = vmatprep.subr.mxu0 0.0
        %577 = vmatpush1.msra.mxu0 %v547
        %578 = vmatprep.subr.mxu0 0.0
        %579 = vmatpush1.msra.mxu0 %v548
        %580 = vmatprep.subr.mxu0 0.0
        %581 = vmatpush1.msra.mxu0 %v549
        %582 = vmatprep.subr.mxu0 0.0
        %583 = vmatpush1.msra.mxu0 %v550
        %584 = vmatprep.subr.mxu0 0.0
        %585 = vmatpush1.msra.mxu0 %v551
        %586 = vmatprep.subr.mxu0 0.0
        %587 = vmatpush1.msra.mxu0 %v552
        %588 = vmatprep.subr.mxu0 0.0
        %589 = vmatpush1.msra.mxu0 %v553
        %590 = vmatprep.subr.mxu0 0.0
        %591 = vmatpush1.msra.mxu0 0.0
        %592 = vmatprep.subr.mxu0 0.0
        %593 = vmatpush1.msra.mxu0 0.0
        %594 = vmatprep.subr.mxu0 0.0
        %595 = vmatpush1.msra.mxu0 0.0
        %596 = vmatprep.subr.mxu0 0.0
        %597 = vmatpush1.msra.mxu0 0.0
        %598 = vmatprep.subr.mxu0 0.0
        %599 = vmatpush1.msra.mxu0 0.0
        %600 = vmatprep.subr.mxu0 0.0
        %601 = vmatpush1.msra.mxu0 0.0
        %602 = vmatprep.subr.mxu0 0.0
        %603 = vmatpush1.msra.mxu0 0.0
        %604 = vmatprep.subr.mxu0 0.0
        %605 = vmatpush1.msra.mxu0 0.0
        %606 = vmatprep.subr.mxu0 0.0
        %607 = vmatpush1.msra.mxu0 0.0
        %608 = vmatprep.subr.mxu0 0.0
        %609 = vmatpush1.msra.mxu0 0.0
        %610 = vmatprep.subr.mxu0 0.0
        %611 = vmatpush1.msra.mxu0 0.0
        %612 = vmatprep.subr.mxu0 0.0
        %613 = vmatpush1.msra.mxu0 0.0
        %614 = vmatprep.subr.mxu0 0.0
        %615 = vmatpush1.msra.mxu0 0.0
        %616 = vmatprep.subr.mxu0 0.0
        %617 = vmatpush1.msra.mxu0 0.0
        %618 = vmatprep.subr.mxu0 0.0
        %619 = vmatpush1.msra.mxu0 0.0
        %620 = vmatprep.subr.mxu0 0.0
        %621 = vmatpush1.msra.mxu0 0.0
        %622 = vmatprep.mubr.f32.mxu0 0.0
        %623 = vmatmul.mubr.f32.gmra.mrb[0].mxu0 %v556
        %v624 = vpop.f32.mrb[0].mxu0
        %v625 = vadd.f32 0.0, %v624
        %v626 = vpop.f32.mrb[0].mxu0
        %627 = vmatprep.mubr.f32.mxu0 0.0
        %628 = vmatmul.mubr.f32.gmra.mrb[0].mxu0 %v557
        %v629 = vpop.f32.mrb[0].mxu0
        %v630 = vadd.f32 0.0, %v629
        %v631 = vpop.f32.mrb[0].mxu0
        %632 = vdwg.mxu0
        %v633 = vsub.f32 0.0, %v625
        %v634 = vsub.f32 0.0, %v630
        %v635 = vmul.f32 %v633, 1.442695
        %v636 = vpow.pop %v635
        %v637 = vmul.f32 %v634, 1.442695
        %v638 = vpow.pop %v637
        %v639 = vstv %s412
        %v640 = vmul.f32 %v458, %v639
        %v641 = vmul.f32 %v459, %v639
        %v642 = vsub.f32 0.0, %v640
        %v643 = vsub.f32 0.0, %v641
        %v644 = vmul.f32 %v642, 1.442695
        %v645 = vpow.pop %v644
        %v646 = vmul.f32 %v643, 1.442695
        %v647 = vpow.pop %v646
        %v648 = vstv %s413
        %v649 = vmul.f32 %v645, %v648
        %v650 = vmul.f32 %v647, %v648
        %v651 = vmul.f32 %v649, %v501
        %v652 = vmul.f32 %v650, %v502
        %653 = vadd.xlane.f32.xlu0 %v651
        %v654 = vpop.xlane.xlu0 %653
        %655 = vadd.xlane.f32.xlu0 %v652
        %v656 = vpop.xlane.xlu0 %655
        %v657 = vmax.f32 %v654, 1e-20
        %v658 = vmax.f32 %v656, 1e-20
        %v659 = vrcp.pop %v657
        %v660 = vrcp.pop %v658
        %v661 = vmul.f32 %v657, %v659
        %v662 = vmul.f32 %v658, %v660
        %v663 = vsub.f32 2.0, %v661
        %v664 = vsub.f32 2.0, %v662
        %v665 = vmul.f32 %v659, %v663
        %v666 = vmul.f32 %v660, %v664
        %v667 = vld [vmem:[%s340] sm:$0xff]
        %v668 = vld [vmem:[%s340 + $0x8] sm:$0xff]
        %v669 = vmul.f32 %v649, %v665
        %v670 = vmul.f32 %v650, %v666
        %v671 = vsub.f32 %v667, %v669
        %v672 = vsub.f32 %v668, %v670
        %v673 = vmul.f32 %v444, %v444
        %v674 = vmul.f32 %v445, %v445
        %v675 = vmul.f32 %v479, %v673
        %v676 = vmul.f32 %v480, %v674
        %v677 = vmul.f32 %v497, %v636
        %v678 = vmul.f32 %v498, %v638
        %v679 = vadd.f32 %v675, %v677
        %v680 = vadd.f32 %v676, %v678
        %v681 = vmul.f32 %v460, %v679
        %v682 = vmul.f32 %v461, %v680
        %v683 = vmul.f32 %v671, %v671
        %v684 = vmul.f32 %v672, %v672
        %v685 = vmul.f32 %v501, %v683
        %v686 = vmul.f32 %v502, %v684
        %v687 = vadd.f32 %v681, %v685
        %v688 = vadd.f32 %v682, %v686
        %689 = vadd.xlane.f32.xlu0 %v687
        %v690 = vpop.xlane.xlu0 %689
        %691 = vadd.xlane.f32.xlu0 %v688
        %v692 = vpop.xlane.xlu0 %691
        %v693 = vadd.f32 %v440, %v690
        %v694 = vadd.f32 %v441, %v692
        %v695 = vmul.f32 %v693, %v430
        %v696 = vmul.f32 %v694, %v431
        %vm697 = vcmask 7168
        %698 = vst.msk [vmem:[%s409] sm:$0xff] %vm697, %v695
        %699 = vst.msk [vmem:[%s409 + $0x8] sm:$0xff] %vm697, %v696
        %s700 = smul.u32 2, %s24
        %p701 = scmp.lt.s32.totalorder %s700, 3
        %s702 = scalar_select %p701, %s700, 3
        %s703 = smul.addr %s702, 8
        %s704 = scalar_lea.vmem %s6, %s703
        // Predicated region
        $region61: #{tpu_custom_call.1} parent=43 // pred_check
          %p705 = pneg %p193
        $region62: #{tpu_custom_call.1} parent=43 // pred_check_branch
          %707 = sbr.rel (%p705) target = $region64
        $region63: #{tpu_custom_call.1} parent=43 // pred_region
          %s708 = smul.u32 2, %s24
        $region64: #{tpu_custom_call.1} parent=43 // pred_fallthru
          _
      $region44: #{tpu_custom_call.1} parent=5 // pred_fallthru
        _
      %p709 = scmp.le.s32.totalorder 2, %s19
      // Predicated region
      $region65: #{tpu_custom_call.1} parent=5 // pred_check
        %p710 = pneg %p709
      $region66: #{tpu_custom_call.1} parent=5 // pred_check_branch
        %712 = sbr.rel (%p710) target = $region68
      $region67: #{tpu_custom_call.1} parent=5 // pred_region
        %s713 = ssub.s32 %s19, 2
        // Predicated region
        $region69: #{tpu_custom_call.1} parent=67 // pred_check
          %p714 = pneg %p199
        $region70: #{tpu_custom_call.1} parent=67 // pred_check_branch
          %716 = sbr.rel (%p714) target = $region72
        $region71: #{tpu_custom_call.1} parent=67 // pred_region
          %s717 = smul.u32 2, %s25
          %p718 = scmp.lt.s32.totalorder %s717, 3
          %s719 = scalar_select %p718, %s717, 3
          %s720 = smul.addr %s719, 8
          %s721 = scalar_lea.vmem %s6, %s720
        $region72: #{tpu_custom_call.1} parent=67 // pred_fallthru
          _
      $region68: #{tpu_custom_call.1} parent=5 // pred_fallthru
        _
    $region6: #{tpu_custom_call.1} parent=1 // loop_footer
      %s23 = sadd.s32 1, %s19
    $region7: #{tpu_custom_call.1} parent=1 // loop_footer_branch
      %18 = sbr.rel target = $region3
    $region8: #{tpu_custom_call.1} parent=1 // loop_exit
      _
    %722 = vsyncpa [#allocation3], 1
    %s723 = scalar_lea.sflag [#allocation3], 1
    %724 = vsyncpa %s723, 1
    %725 = vsyncpa [#allocation7], 1
    %s726 = scalar_lea.sflag [#allocation7], 1
    %727 = vsyncpa %s726, 1
    %728 = vsyncpa [#allocation4], 1
    %s729 = scalar_lea.sflag [#allocation4], 1
    %730 = vsyncpa %s729, 1

</llo_original>
